<compile_context>
chip_gen: v7x
topology: tpu7x:2x2x1
jax: 0.10.0
libtpu: 0.0.40
codegen_flags: <defaults>
</compile_context>

<pallas_src>
import functools

import jax
import jax.numpy as jnp
from jax.experimental import pallas as pl
from jax.experimental.pallas import tpu as pltpu

_OUT_LANES = 128  # lane-dense width for the per-row scalar outputs


# ----------------------------------------------------------------------------
# Hardware / tiling helpers
# ----------------------------------------------------------------------------
def _device_kind():
    try:
        return jax.devices()[0].device_kind.lower()
    except Exception:
        return ""


def _vmem_capacity():
    try:
        return int(pltpu.get_tpu_info().vmem_capacity_bytes)
    except Exception:
        return 64 * 1024 * 1024 if "v7" in _device_kind() else 128 * 1024 * 1024


def _pick_tile(dim, desired, granule):
    """Largest t <= min(desired, dim) with dim % t == 0, preferring granule multiples."""
    desired = min(desired, dim)
    if desired >= dim:
        return dim
    t = (desired // granule) * granule
    while t >= granule:
        if dim % t == 0:
            return t
        t -= granule
    for t in range(desired, 0, -1):
        if dim % t == 0:
            return t
    return dim


def _maybe_buffered_spec(block_shape, index_map, depth):
    """BlockSpec with N-deep pipelining when supported; plain BlockSpec otherwise."""
    if depth <= 2:
        return pl.BlockSpec(block_shape, index_map)
    try:
        return pl.BlockSpec(block_shape, index_map, pipeline_mode=pl.Buffered(depth))
    except (TypeError, AttributeError):
        return pl.BlockSpec(block_shape, index_map)


# ----------------------------------------------------------------------------
# Kernel 1: tiled fused linear  y = act(x @ W + b)
#   bf16 operands -> MXU with f32 accumulation; bias add in f32; tanh epilogue
#   in bf16 on v6e/v7x (bf16 VPU/EUP), f32 on v5e.
# ----------------------------------------------------------------------------
def _linear_kernel_fused_k(x_ref, w_ref, b_ref, o_ref, *, activation, epi_dtype):
    y = jnp.dot(x_ref[...], w_ref[...], preferred_element_type=jnp.float32)
    y = y + b_ref[...]                              # [tm, tn] f32, bias broadcasts
    if activation == "tanh":
        y = jnp.tanh(y.astype(epi_dtype))
    o_ref[...] = y.astype(o_ref.dtype)


def _linear_kernel_split_k(x_ref, w_ref, b_ref, o_ref, acc_ref, *, activation,
                           epi_dtype):
    k = pl.program_id(2)

    @pl.when(k == 0)
    def _():
        acc_ref[...] = jnp.zeros_like(acc_ref)

    acc_ref[...] += jnp.dot(
        x_ref[...], w_ref[...], preferred_element_type=jnp.float32
    )

    @pl.when(k == pl.num_programs(2) - 1)
    def _():
        y = acc_ref[...] + b_ref[...]
        if activation == "tanh":
            y = jnp.tanh(y.astype(epi_dtype))
        o_ref[...] = y.astype(o_ref.dtype)


def linear(x, w, b, activation=None, out_dtype=jnp.bfloat16):
    M, K = x.shape
    K2, N = w.shape
    assert K == K2
    kind = _device_kind()
    vmem_cap = _vmem_capacity()
    budget = min(vmem_cap // 2, 48 * 1024 * 1024)
    out_isz = jnp.dtype(out_dtype).itemsize

    # Per-chip desired tiles: keep arithmetic intensity above the HBM roofline
    # threshold (v6e ~650 flops/byte, v7x ~310, v5e ~240) while fitting VMEM.
    if "v7" in kind:
        d_tm, d_tn, d_tk = 512, 512, 512
    elif "v6" in kind:
        d_tm, d_tn, d_tk = 512, 1024, 512
    else:  # v5e / unknown: 128-granular MXU, lower compute-bound threshold
        d_tm, d_tn, d_tk = 256, 512, 512

    tm = _pick_tile(M, d_tm, 8)
    tn = _pick_tile(N, d_tn, 128)

    def blk_bytes(tm_, tn_, tk_, with_acc):
        bts = 2 * (tm_ * tk_ * x.dtype.itemsize + tk_ * tn_ * w.dtype.itemsize
                   + tn_ * 4 + tm_ * tn_ * out_isz)
        if with_acc:
            bts += tm_ * tn_ * 4
        return bts

    # Prefer dropping the K grid axis (single MXU call per output tile, no
    # accumulator scratch / pl.when / WAR hazard) when full-K blocks fit VMEM.
    if blk_bytes(tm, tn, K, False) <= budget:
        tk = K
    else:
        tk = _pick_tile(K, d_tk, 128)
        while blk_bytes(tm, tn, tk, True) > budget and tk > 128:
            tk = _pick_tile(K, max(128, tk // 2), 128)
        while blk_bytes(tm, tn, tk, True) > budget and tn > 128:
            tn = _pick_tile(N, max(128, tn // 2), 128)

    # v7x megacore: make sure both TensorCores get at least one parallel block.
    if "v7" in kind and (M // tm) * (N // tn) < 2:
        if N // tn < 2 and N >= 256:
            tn = _pick_tile(N, max(128, N // 2), 128)
        elif M // tm < 2 and M >= 16:
            tm = _pick_tile(M, max(8, M // 2), 8)

    assert M % tm == 0 and N % tn == 0 and K % tk == 0, (M, N, K, tm, tn, tk)

    epi_dtype = jnp.bfloat16 if ("v6" in kind or "v7" in kind) else jnp.float32
    gm, gn = M // tm, N // tn
    split_k = tk < K

    cost = pl.CostEstimate(
        flops=2 * M * N * K,
        transcendentals=M * N if activation == "tanh" else 0,
        bytes_accessed=gn * M * K * x.dtype.itemsize     # x re-read per N tile
        + gm * K * N * w.dtype.itemsize                  # W re-read per M tile
        + gm * N * 4 + M * N * out_isz,
    )
    vmem_limit = int(min(vmem_cap * 3 // 4,
                         max(32 * 1024 * 1024,
                             blk_bytes(tm, tn, tk, split_k) * 3 // 2)))

    if split_k:
        kern = functools.partial(_linear_kernel_split_k,
                                 activation=activation, epi_dtype=epi_dtype)
        grid = (gm, gn, K // tk)
        in_specs = [
            pl.BlockSpec((tm, tk), lambda i, j, k: (i, k)),
            pl.BlockSpec((tk, tn), lambda i, j, k: (k, j)),
            pl.BlockSpec((1, tn), lambda i, j, k: (0, j)),
        ]
        out_specs = pl.BlockSpec((tm, tn), lambda i, j, k: (i, j))
        scratch = [pltpu.VMEM((tm, tn), jnp.float32)]
        dims = ("parallel", "parallel", "arbitrary")
    else:
        kern = functools.partial(_linear_kernel_fused_k,
                                 activation=activation, epi_dtype=epi_dtype)
        grid = (gm, gn)
        in_specs = [
            pl.BlockSpec((tm, K), lambda i, j: (i, 0)),
            pl.BlockSpec((K, tn), lambda i, j: (0, j)),
            pl.BlockSpec((1, tn), lambda i, j: (0, j)),
        ]
        out_specs = pl.BlockSpec((tm, tn), lambda i, j: (i, j))
        scratch = []
        dims = ("parallel", "parallel")

    return pl.pallas_call(
        kern,
        out_shape=jax.ShapeDtypeStruct((M, N), out_dtype),
        grid_spec=pltpu.PrefetchScalarGridSpec(
            num_scalar_prefetch=0, grid=grid,
            in_specs=in_specs, out_specs=out_specs, scratch_shapes=scratch),
        compiler_params=pltpu.CompilerParams(
            dimension_semantics=dims, vmem_limit_bytes=vmem_limit),
        cost_estimate=cost,
    )(x, w, b.reshape(1, N))


# ----------------------------------------------------------------------------
# Kernel 2: fused LM-head + Categorical (flash cross-entropy).
# Grid = (rows/tm, V/tn); vocab is the (last, "arbitrary") reduction axis.
# Per V-tile: logits = h @ W_head + b (bf16 MXU, f32 acc), then online-softmax
# running (max, sum-exp, sum exp*logit) plus the one-hot-gathered action logit.
#   entropy  = logZ - E_p[logit]
#   log_prob = logit[action] - logZ
# [rows, V] logits never touch HBM; outputs are lane-dense (128 wide).
# ----------------------------------------------------------------------------
def _fused_head_categorical_kernel(h_ref, w_ref, b_ref, act_ref,
                                   logp_ref, ent_ref,
                                   m_sc, l_sc, s_sc, a_sc):
    j = pl.program_id(1)
    tn = w_ref.shape[-1]

    @pl.when(j == 0)
    def _():
        m_sc[...] = jnp.full_like(m_sc, -jnp.inf)
        l_sc[...] = jnp.zeros_like(l_sc)
        s_sc[...] = jnp.zeros_like(s_sc)
        a_sc[...] = jnp.zeros_like(a_sc)

    logits = jnp.dot(h_ref[...], w_ref[...], preferred_element_type=jnp.float32)
    logits = logits + b_ref[...]                           # [tm, tn] f32

    m_prev = m_sc[...]
    m_new = jnp.maximum(m_prev, jnp.max(logits, axis=-1, keepdims=True))
    alpha = jnp.exp(m_prev - m_new)
    e = jnp.exp(logits - m_new)
    l_sc[...] = alpha * l_sc[...] + jnp.sum(e, axis=-1, keepdims=True)
    s_sc[...] = alpha * s_sc[...] + jnp.sum(e * logits, axis=-1, keepdims=True)
    m_sc[...] = m_new

    # Gather the action logit within this vocab tile: compare a plain iota
    # against (action - j*tn), a per-row (tm,1) subtract instead of a full-tile
    # VALU add.  TODO(synk): out-of-range / padded action ids contribute 0
    # instead of raising or being masked.
    tm = logits.shape[0]
    ids = jax.lax.broadcasted_iota(jnp.int32, (tm, tn), 1)
    target = act_ref[...] - j * tn                         # [tm, 1] int32
    onehot = ids == target
    a_sc[...] += jnp.sum(jnp.where(onehot, logits, 0.0), axis=-1, keepdims=True)

    @pl.when(j == pl.num_programs(1) - 1)
    def _():
        l = l_sc[...]
        logz = m_sc[...] + jnp.log(l)
        logp = a_sc[...] - logz                            # [tm, 1]
        ent = logz - s_sc[...] / l                         # exact divide
        # lane-dense (unmasked) stores: broadcast the scalar across 128 lanes
        logp_ref[...] = jnp.broadcast_to(logp, logp_ref.shape)
        ent_ref[...] = jnp.broadcast_to(ent, ent_ref.shape)


def fused_lm_head_categorical(h, w_head, b_head, actions):
    Mg, H = h.shape
    H2, V = w_head.shape
    assert H == H2
    kind = _device_kind()
    vmem_cap = _vmem_capacity()
    budget = min(vmem_cap // 2, 48 * 1024 * 1024)

    if "v7" in kind:
        d_tm, d_tn = 512, 256          # 64 MiB VMEM -> smaller vocab tile
    elif "v6" in kind:
        d_tm, d_tn = 512, 512
    else:
        d_tm, d_tn = 256, 512

    tm = _pick_tile(Mg, d_tm, 8)
    tn = _pick_tile(V, d_tn, 128)

    # v7x megacore: the only parallel axis is rows -> want >= 2 row blocks
    # whenever the row count is large enough to pay for the split.
    if "v7" in kind and Mg // tm < 2 and Mg >= 512:
        tm = _pick_tile(Mg, max(8, Mg // 2), 8)

    # Deepen W_head buffering only when a single row block streams the whole
    # vocab (irreducibly memory-bound) and there are enough vocab steps.
    depth = 3 if (Mg // tm == 1 and V // tn >= 3) else 2

    def blk_bytes(tm_, tn_, depth_):
        return (2 * tm_ * H * h.dtype.itemsize              # h (resident per i)
                + depth_ * H * tn_ * w_head.dtype.itemsize  # W_head stream
                + 2 * tn_ * 4                                # bias
                + 2 * tm_ * 4                                # actions
                + 2 * 2 * tm_ * _OUT_LANES * 4               # two outputs
                + 4 * tm_ * 4)                               # f32 scratch

    while blk_bytes(tm, tn, depth) > budget and tn > 128:
        tn = _pick_tile(V, max(128, tn // 2), 128)
    if blk_bytes(tm, tn, depth) > budget and depth > 2:
        depth = 2
    while blk_bytes(tm, tn, depth) > budget and tm > 8:
        tm = _pick_tile(Mg, max(8, tm // 2), 8)

    assert Mg % tm == 0 and V % tn == 0, (Mg, V, tm, tn)

    actions2d = actions.reshape(Mg, 1).astype(jnp.int32)
    cost = pl.CostEstimate(
        flops=2 * Mg * H * V + 8 * Mg * V,
        transcendentals=Mg * V,
        bytes_accessed=Mg * H * h.dtype.itemsize             # h read once per row tile
        + (Mg // tm) * H * V * w_head.dtype.itemsize          # W_head re-read per row tile
        + (Mg // tm) * V * 4 + Mg * 4 + 2 * Mg * _OUT_LANES * 4,
    )
    vmem_limit = int(min(vmem_cap * 3 // 4,
                         max(32 * 1024 * 1024, blk_bytes(tm, tn, depth) * 3 // 2)))

    logp, ent = pl.pallas_call(
        _fused_head_categorical_kernel,
        out_shape=(
            jax.ShapeDtypeStruct((Mg, _OUT_LANES), jnp.float32),
            jax.ShapeDtypeStruct((Mg, _OUT_LANES), jnp.float32),
        ),
        grid_spec=pltpu.PrefetchScalarGridSpec(
            num_scalar_prefetch=0,
            grid=(Mg // tm, V // tn),
            in_specs=[
                pl.BlockSpec((tm, H), lambda i, j: (i, 0)),
                _maybe_buffered_spec((H, tn), lambda i, j: (0, j), depth),
                pl.BlockSpec((1, tn), lambda i, j: (0, j)),
                pl.BlockSpec((tm, 1), lambda i, j: (i, 0)),
            ],
            out_specs=(
                pl.BlockSpec((tm, _OUT_LANES), lambda i, j: (i, 0)),
                pl.BlockSpec((tm, _OUT_LANES), lambda i, j: (i, 0)),
            ),
            scratch_shapes=[pltpu.VMEM((tm, 1), jnp.float32)] * 4,
        ),
        compiler_params=pltpu.CompilerParams(
            dimension_semantics=("parallel", "arbitrary"),
            vmem_limit_bytes=vmem_limit,
        ),
        cost_estimate=cost,
    )(h, w_head, b_head.reshape(1, V), actions2d)
    return logp[:, 0], ent[:, 0]


# ----------------------------------------------------------------------------
# Synthetic LMActor (tiny stand-in for the HF causal LM; weights bf16, bias f32)
# ----------------------------------------------------------------------------
def init_params(key, vocab_size, hidden):
    k1, k2, k3, k4, k5 = jax.random.split(key, 5)
    return {
        "embedding": (jax.random.normal(k1, (vocab_size, hidden), jnp.float32)
                      * 0.02).astype(jnp.bfloat16),
        "w1": (jax.random.normal(k2, (hidden, hidden), jnp.float32)
               * 0.02).astype(jnp.bfloat16),
        "b1": jax.random.normal(k3, (hidden,), jnp.float32) * 0.02,
        "w_head": (jax.random.normal(k4, (hidden, vocab_size), jnp.float32)
                   * 0.02).astype(jnp.bfloat16),
        "b_head": jax.random.normal(k5, (vocab_size,), jnp.float32) * 0.02,
    }


def lm_actor_forward(params, obs, actions, max_gen_len, pad_token_id=0):
    """ActorOutput(log_prob, entropy) for the obs+actions branch of forward()."""
    B, T = obs.shape
    G = max_gen_len
    assert T >= G, "max_gen_len must not exceed the sequence length"
    # TODO(synk): gen_attention_mask (obs != pad_token_id) is computed by the
    # reference model but the synthetic LM body has no attention, so it is unused.
    _ = obs != pad_token_id

    # The synthetic body is position-independent (no attention), so only the
    # last G positions contribute to the output: slice token ids BEFORE the
    # embedding gather / body matmul (T/G x less work, no h_g slice copy).
    # TODO(synk): if a real HF causal-LM body (with attention) replaces this,
    # the full sequence must flow through the body before slicing.
    obs_g = obs[:, -G:]
    emb = params["embedding"][obs_g]                     # [B, G, H] bf16 gather
    H = emb.shape[-1]
    x = emb.reshape(B * G, H)

    h = linear(x, params["w1"], params["b1"],
               activation="tanh", out_dtype=jnp.bfloat16)   # [B*G, H] bf16

    log_prob, entropy = fused_lm_head_categorical(
        h, params["w_head"], params["b_head"], actions.reshape(B * G))
    return log_prob.reshape(B, G), entropy.reshape(B, G)


if __name__ == "__main__":
    B, T, G, H, V = 2, 8, 4, 128, 512   # batch, seq, max_gen_len, hidden, vocab
    key = jax.random.PRNGKey(0)
    kp, ko, ka = jax.random.split(key, 3)

    params = init_params(kp, V, H)
    obs = jax.random.randint(ko, (B, T), 1, V, dtype=jnp.int32)       # token ids
    actions = jax.random.randint(ka, (B, G), 0, V, dtype=jnp.int32)   # sampled actions

    log_prob, entropy = lm_actor_forward(params, obs, actions, max_gen_len=G)
    jax.block_until_ready((log_prob, entropy))

    # Reference check in plain JAX (torch.distributions.Categorical semantics),
    # running the full sequence through the body and slicing the hidden states
    # to the last G positions, exactly like the original module.
    emb_f = params["embedding"].astype(jnp.float32)[obs].reshape(B * T, H)
    h_ref = jnp.tanh(emb_f @ params["w1"].astype(jnp.float32) + params["b1"])
    h_ref = h_ref.astype(jnp.bfloat16).astype(jnp.float32)
    hg_ref = h_ref.reshape(B, T, H)[:, -G:, :].reshape(B * G, H)
    logits_ref = hg_ref @ params["w_head"].astype(jnp.float32) + params["b_head"]
    lp_full = jax.nn.log_softmax(logits_ref, axis=-1)
    logp_ref = jnp.take_along_axis(
        lp_full, actions.reshape(B * G, 1), axis=-1)[:, 0].reshape(B, G)
    ent_ref = -jnp.sum(jnp.exp(lp_full) * lp_full, axis=-1).reshape(B, G)

    assert jnp.allclose(log_prob, logp_ref, atol=1e-2, rtol=1e-2), "log_prob mismatch"
    assert jnp.allclose(entropy, ent_ref, atol=1e-2, rtol=1e-2), "entropy mismatch"

    print("KERNEL_OK")
</pallas_src>

<mosaic_0001>
module attributes {stable_mosaic.version = 11 : i64} {
  func.func @_linear_kernel_fused_k(%arg0: i32, %arg1: i32, %arg2: memref<8x128xbf16, #tpu.memory_space<vmem>>, %arg3: memref<128x128xbf16, #tpu.memory_space<vmem>>, %arg4: memref<1x128xf32, #tpu.memory_space<vmem>>, %arg5: memref<8x128xbf16, #tpu.memory_space<vmem>>) attributes {dimension_semantics = [#tpu.dimension_semantics<parallel>, #tpu.dimension_semantics<parallel>], iteration_bounds = array<i64: 1, 1>, scalar_prefetch = 0 : i64, scratch_operands = 0 : i64, tpu.core_type = #tpu.core_type<tc>, window_params = [{transform_indices = @transform_0, window_bounds = array<i64: 8, 128>}, {transform_indices = @transform_1, window_bounds = array<i64: 128, 128>}, {transform_indices = @transform_2, window_bounds = array<i64: 1, 128>}, {transform_indices = @transform_3, window_bounds = array<i64: 8, 128>}]} {
    %c0 = arith.constant 0 : index
    %c0_0 = arith.constant 0 : index
    %0 = vector.load %arg2[%c0, %c0_0] : memref<8x128xbf16, #tpu.memory_space<vmem>>, vector<8x128xbf16>
    %c0_1 = arith.constant 0 : index
    %c0_2 = arith.constant 0 : index
    %1 = vector.load %arg3[%c0_1, %c0_2] : memref<128x128xbf16, #tpu.memory_space<vmem>>, vector<128x128xbf16>
    %cst = arith.constant dense<0.000000e+00> : vector<8x128xf32>
    %2 = tpu.matmul %0, %1, %cst {dimension_numbers = #tpu.dot_dimension_numbers<[1], [0], [0], [1], [0, 0, 1, 1], [], []>} : vector<8x128xbf16>, vector<128x128xbf16>, vector<8x128xf32> -> vector<8x128xf32>
    %c0_3 = arith.constant 0 : index
    %c0_4 = arith.constant 0 : index
    %3 = vector.load %arg4[%c0_3, %c0_4] : memref<1x128xf32, #tpu.memory_space<vmem>>, vector<1x128xf32>
    %4 = vector.broadcast %3 : vector<1x128xf32> to vector<8x128xf32>
    %5 = arith.addf %2, %4 : vector<8x128xf32>
    %6 = math.tanh %5 : vector<8x128xf32>
    %7 = arith.truncf %6 : vector<8x128xf32> to vector<8x128xbf16>
    %c0_5 = arith.constant 0 : index
    %c0_6 = arith.constant 0 : index
    %8 = vector.load %arg5[%c0_5, %c0_6] : memref<8x128xbf16, #tpu.memory_space<vmem>>, vector<8x128xbf16>
    tpu.vector_store %arg5[%c0_5, %c0_6], %7 {strides = array<i32>} : memref<8x128xbf16, #tpu.memory_space<vmem>>, vector<8x128xbf16>,
    return
  }
  func.func @transform_0(%arg0: i32, %arg1: i32) -> (i32, i32) {
    %c0_i32 = arith.constant 0 : i32
    %c0_i32_0 = arith.constant 0 : i32
    return %arg0, %c0_i32 : i32, i32
  }
  func.func @transform_1(%arg0: i32, %arg1: i32) -> (i32, i32) {
    %c0_i32 = arith.constant 0 : i32
    %c0_i32_0 = arith.constant 0 : i32
    return %c0_i32, %arg1 : i32, i32
  }
  func.func @transform_2(%arg0: i32, %arg1: i32) -> (i32, i32) {
    %c0_i32 = arith.constant 0 : i32
    %c0_i32_0 = arith.constant 0 : i32
    return %c0_i32, %arg1 : i32, i32
  }
  func.func @transform_3(%arg0: i32, %arg1: i32) -> (i32, i32) {
    %c0_i32 = arith.constant 0 : i32
    return %arg0, %arg1 : i32, i32
  }
}

</mosaic_0001>

<llo_original>
// kernel: tpu_custom_call.1
$region0: #{tpu_custom_call.1}
  #allocation0 [shape = 'u32[]', space=smem, size = 0x4, offset = 0x4, fixed_abs, tag = 'smem constant byte address 0x4 - core index']
  #allocation1 [shape = 'u32[144,128]{1,0:T(1,128)}', space=vmem, size = 0x12000, scoped, tag = 'internal scratch']
  %s0 = inlined_call_operand.hbm [shape: bf16[8,128], index: 0, kind: input, shape index: {}]
  %s1 = inlined_call_operand.hbm [shape: bf16[128,128], index: 1, kind: input, shape index: {}]
  %s2 = inlined_call_operand.vmem [shape: f32[1,128], index: 2, kind: input, shape index: {}]
  %s3 = inlined_call_operand.hbm [shape: bf16[8,128], index: 3, kind: output, shape index: {}]
  %s4 = sld [smem:[#allocation0]]
  $region30: #{tpu_custom_call.1} parent=0
    _
  %s6 = ssub.s32 1, %s4
  %s7 = scalar_select 0, %s6, %s4
  $region1: #{tpu_custom_call.1} parent=0
    #allocation2 [shape = 'u8[2048]{0}', space=vmem, size = 0x800, scoped, tag = 'input window, operand 0, single buffered']
    #allocation3 [shape = 's32[1]{0}', space=sflag, size = 0x4, scoped, tag = 'scoped memory for tpu_custom_call.1']
    #allocation4 [shape = 's32[1]{0}', space=sflag, size = 0x4, scoped, tag = 'scoped memory for tpu_custom_call.1']
    #allocation5 [shape = 'u8[32768]{0}', space=vmem, size = 0x8000, scoped, tag = 'input window, operand 1, single buffered']
    #allocation6 [shape = 's32[1]{0}', space=sflag, size = 0x4, scoped, tag = 'scoped memory for tpu_custom_call.1']
    #allocation7 [shape = 'u8[2048]{0}', space=vmem, size = 0x800, scoped, tag = 'output window, operand 0, single buffered']
    %8 = vsyncpa [#allocation3], 0
    %9 = vsyncpa [#allocation6], 0
    %10 = vsyncpa [#allocation4], 0
    // Predicated region
    $region2: #{tpu_custom_call.1} parent=1 // pred_check
      _
    $region3: #{tpu_custom_call.1} parent=1 // pred_check_branch
      %12 = sbr.rel (0) target = $region5
    $region4: #{tpu_custom_call.1} parent=1 // pred_region
      %s14 = ssub.s32 64, 64
      %15 = vsyncadd [#allocation3], %s14
      %s17 = sshll.u32 [#allocation2], 4
      %s18 = int_to_ptr.vmem [resolvable:$true] %s17
      %20 = dma.hbm_to_vmem [thread:$0]  %s0, 64, %s18, [#allocation3]
    $region5: #{tpu_custom_call.1} parent=1 // pred_fallthru
      _
    // Predicated region
    $region6: #{tpu_custom_call.1} parent=1 // pred_check
      _
    $region7: #{tpu_custom_call.1} parent=1 // pred_check_branch
      %22 = sbr.rel (0) target = $region9
    $region8: #{tpu_custom_call.1} parent=1 // pred_region
      %s24 = ssub.s32 1024, 1024
      %25 = vsyncadd [#allocation6], %s24
      %s26 = sshll.u32 [#allocation5], 4
      %s27 = int_to_ptr.vmem [resolvable:$true] %s26
      %32 = dma.hbm_to_vmem [thread:$0]  %s1, 1024, %s27, [#allocation6], 64, 64, 4
    $region9: #{tpu_custom_call.1} parent=1 // pred_fallthru
      _
    // Predicated region
    $region10: #{tpu_custom_call.1} parent=1 // pred_check
      _
    $region11: #{tpu_custom_call.1} parent=1 // pred_check_branch
      %34 = sbr.rel (0) target = $region13
    $region12: #{tpu_custom_call.1} parent=1 // pred_region
      _
    $region13: #{tpu_custom_call.1} parent=1 // pred_fallthru
      _
    // Predicated region
    $region14: #{tpu_custom_call.1} parent=1 // pred_check
      _
    $region15: #{tpu_custom_call.1} parent=1 // pred_check_branch
      %36 = sbr.rel (0) target = $region17
    $region16: #{tpu_custom_call.1} parent=1 // pred_region
      %37 = dma.done [#allocation3], 64
    $region17: #{tpu_custom_call.1} parent=1 // pred_fallthru
      _
    // Predicated region
    $region18: #{tpu_custom_call.1} parent=1 // pred_check
      _
    $region19: #{tpu_custom_call.1} parent=1 // pred_check_branch
      %39 = sbr.rel (0) target = $region21
    $region20: #{tpu_custom_call.1} parent=1 // pred_region
      %40 = dma.done [#allocation6], 1024
    $region21: #{tpu_custom_call.1} parent=1 // pred_fallthru
      _
    %v42 = vld [vmem:[#allocation2] sm:$0xf]
    %v43 = vld [vmem:[#allocation5] sm:$0xf]
    %v44 = vld [vmem:[#allocation5 + $0x4] sm:$0xf]
    %v45 = vld [vmem:[#allocation5 + $0x8] sm:$0xf]
    %v46 = vld [vmem:[#allocation5 + $0xc] sm:$0xf]
    %v47 = vld [vmem:[#allocation5 + $0x10] sm:$0xf]
    %v48 = vld [vmem:[#allocation5 + $0x14] sm:$0xf]
    %v49 = vld [vmem:[#allocation5 + $0x18] sm:$0xf]
    %v50 = vld [vmem:[#allocation5 + $0x1c] sm:$0xf]
    %v51 = vld [vmem:[#allocation5 + $0x20] sm:$0xf]
    %v52 = vld [vmem:[#allocation5 + $0x24] sm:$0xf]
    %v53 = vld [vmem:[#allocation5 + $0x28] sm:$0xf]
    %v54 = vld [vmem:[#allocation5 + $0x2c] sm:$0xf]
    %v55 = vld [vmem:[#allocation5 + $0x30] sm:$0xf]
    %v56 = vld [vmem:[#allocation5 + $0x34] sm:$0xf]
    %v57 = vld [vmem:[#allocation5 + $0x38] sm:$0xf]
    %v58 = vld [vmem:[#allocation5 + $0x3c] sm:$0xf]
    %v59 = vld [vmem:[%s2] sm:$0x1]
    %v61 = vlaneseq
    %v62 = vshrl.u32 %v61, 7
    %v63 = vsub.s32 0, %v62
    %v64 = vrot.slane %v59, %v63
    %v82 = vunpack.c.l.b16 %v43
    %v83 = vunpack.c.l.b16 %v44
    %v84 = vunpack.c.l.b16 %v45
    %v85 = vunpack.c.l.b16 %v46
    %v86 = vunpack.c.l.b16 %v47
    %v87 = vunpack.c.l.b16 %v48
    %v88 = vunpack.c.l.b16 %v49
    %v89 = vunpack.c.l.b16 %v50
    %v90 = vunpack.c.l.b16 %v51
    %v91 = vunpack.c.l.b16 %v52
    %v92 = vunpack.c.l.b16 %v53
    %v93 = vunpack.c.l.b16 %v54
    %v94 = vunpack.c.l.b16 %v55
    %v95 = vunpack.c.l.b16 %v56
    %v96 = vunpack.c.l.b16 %v57
    %v97 = vunpack.c.l.b16 %v58
    %v98 = vpack.c.b16 %v83, %v82
    %v99 = vpack.c.b16 %v85, %v84
    %v100 = vpack.c.b16 %v87, %v86
    %v101 = vpack.c.b16 %v89, %v88
    %v102 = vpack.c.b16 %v91, %v90
    %v103 = vpack.c.b16 %v93, %v92
    %v104 = vpack.c.b16 %v95, %v94
    %v105 = vpack.c.b16 %v97, %v96
    %114 = vmatprep.subr.bf16.mxu0 0
    %115 = vmatpush1.bf16.msra.mxu0 %v98
    %116 = vmatprep.subr.bf16.mxu0 0
    %117 = vmatpush1.bf16.msra.mxu0 %v99
    %118 = vmatprep.subr.bf16.mxu0 0
    %119 = vmatpush1.bf16.msra.mxu0 %v100
    %120 = vmatprep.subr.bf16.mxu0 0
    %121 = vmatpush1.bf16.msra.mxu0 %v101
    %122 = vmatprep.subr.bf16.mxu0 0
    %123 = vmatpush1.bf16.msra.mxu0 %v102
    %124 = vmatprep.subr.bf16.mxu0 0
    %125 = vmatpush1.bf16.msra.mxu0 %v103
    %126 = vmatprep.subr.bf16.mxu0 0
    %127 = vmatpush1.bf16.msra.mxu0 %v104
    %128 = vmatprep.subr.bf16.mxu0 0
    %129 = vmatpush1.bf16.msra.mxu0 %v105
    %130 = vmatprep.subr.bf16.mxu0 0
    %131 = vmatpush1.bf16.msra.mxu0 0
    %132 = vmatprep.subr.bf16.mxu0 0
    %133 = vmatpush1.bf16.msra.mxu0 0
    %134 = vmatprep.subr.bf16.mxu0 0
    %135 = vmatpush1.bf16.msra.mxu0 0
    %136 = vmatprep.subr.bf16.mxu0 0
    %137 = vmatpush1.bf16.msra.mxu0 0
    %138 = vmatprep.subr.bf16.mxu0 0
    %139 = vmatpush1.bf16.msra.mxu0 0
    %140 = vmatprep.subr.bf16.mxu0 0
    %141 = vmatpush1.bf16.msra.mxu0 0
    %142 = vmatprep.subr.bf16.mxu0 0
    %143 = vmatpush1.bf16.msra.mxu0 0
    %144 = vmatprep.subr.bf16.mxu0 0
    %145 = vmatpush1.bf16.msra.mxu0 0
    %146 = vmatprep.mubr.bf16.mxu0 0
    %147 = vmatmul.mubr.bf16.gmra.mrb[0].mxu0 %v42
    %v148 = vpop.f32.mrb[0].mxu0
    %v149 = vadd.f32 %v64, %v148
    %v150 = vpop.f32.mrb[0].mxu0
    %v151 = vpop.f32.mrb[0].mxu0
    %v152 = vpop.f32.mrb[0].mxu0
    %153 = vdwg.mxu0
    %v154 = vtanh.pop %v149
    %v155 = vpack.c.bf16 %v154, %v154
    %156 = vst [vmem:[#allocation7] sm:$0xf] %v155
    // Predicated region
    $region22: #{tpu_custom_call.1} parent=1 // pred_check
      _
    $region23: #{tpu_custom_call.1} parent=1 // pred_check_branch
      %158 = sbr.rel (0) target = $region25
    $region24: #{tpu_custom_call.1} parent=1 // pred_region
      %s160 = ssub.s32 64, 64
      %161 = vsyncadd [#allocation4], %s160
      %s163 = sshll.u32 [#allocation7], 4
      %s164 = int_to_ptr.vmem [resolvable:$true] %s163
      %166 = dma.vmem_to_hbm [thread:$0]  %s164, 64, %s3, [#allocation4]
    $region25: #{tpu_custom_call.1} parent=1 // pred_fallthru
      _
    // Predicated region
    $region26: #{tpu_custom_call.1} parent=1 // pred_check
      _
    $region27: #{tpu_custom_call.1} parent=1 // pred_check_branch
      %168 = sbr.rel (0) target = $region29
    $region28: #{tpu_custom_call.1} parent=1 // pred_region
      %169 = dma.done [#allocation4], 64
    $region29: #{tpu_custom_call.1} parent=1 // pred_fallthru
      _
    %170 = vsyncpa [#allocation3], 1
    %171 = vsyncpa [#allocation6], 1
    %172 = vsyncpa [#allocation4], 1

</llo_original>
